<compile_context>
chip_gen: v6e
topology: v6e:2x2x1
jax: 0.10.0
libtpu: 0.0.40
codegen_flags: <defaults>
</compile_context>

<pallas_src>
import numpy as np
import jax
import jax.numpy as jnp
from jax.experimental import pallas as pl
from jax.experimental.pallas import tpu as pltpu


# ----------------------------------------------------------------------------
# Primary path: pure HBM->HBM DMA (no VMEM staging, no grid).
# ----------------------------------------------------------------------------
def _crop_concat_dma(tensors, h, w, Cs, C_out, dtype):
    N = int(tensors[0].shape[0])
    n_in = len(tensors)
    offs = [int(x) for x in np.cumsum([0] + list(Cs))]

    def kernel(*refs):
        in_refs = refs[:n_in]
        out_ref = refs[n_in]
        sem = refs[n_in + 1]
        copies = []
        for i, r in enumerate(in_refs):
            # Strided HBM->HBM copy: crop the source window (offsets are 0 so
            # the tiled minor dims stay tile-aligned) and scatter it into this
            # input's channel range of the output.  DMA has no lane-alignment
            # requirement, so the non-128-multiple channel offsets are free.
            cp = pltpu.make_async_copy(
                r.at[:, :, :h, :w],
                out_ref.at[:, offs[i]:offs[i + 1], :, :],
                sem.at[i],
            )
            cp.start()
            copies.append(cp)
        for cp in copies:
            cp.wait()

    return pl.pallas_call(
        kernel,
        out_shape=jax.ShapeDtypeStruct((N, C_out, h, w), dtype),
        in_specs=[pl.BlockSpec(memory_space=pl.ANY) for _ in tensors],
        out_specs=pl.BlockSpec(memory_space=pl.ANY),
        scratch_shapes=[pltpu.SemaphoreType.DMA((n_in,))],
    )(*tensors)


# ----------------------------------------------------------------------------
# Fallback path: VMEM-staged auto-pipelined copy (previously verified design,
# with the review's robustness fixes).  Only used if the DMA path cannot lower.
# ----------------------------------------------------------------------------
def _crop_concat_vmem(tensors, h, w, Cs, C_out, dtype):
    N = int(tensors[0].shape[0])
    Ks = [int(c) * h * w for c in Cs]
    K_out = int(sum(Ks))
    offs = [int(x) for x in np.cumsum([0] + Ks)]

    # Crop + flatten in the wrapper so the kernel does contiguous 1-D copies.
    flat_inputs = [t[:, :, :h, :w].reshape(N, k) for t, k in zip(tensors, Ks)]

    itemsize = np.dtype(dtype).itemsize
    sub = max(8, 32 // itemsize)                 # dtype-aware sublane multiple
    bytes_per_row = 2 * K_out * itemsize         # inputs + output, per batch row
    budget = 16 * 1024 * 1024                    # total resident budget (incl. double-buffer)
    rows = max(sub, (budget // (2 * bytes_per_row)) // sub * sub)
    Nb = N if rows >= N else int(rows)
    grid = (pl.cdiv(N, Nb),)

    def kernel(*refs):
        in_refs, out_ref = refs[:-1], refs[-1]
        for i, r in enumerate(in_refs):
            out_ref[:, offs[i]:offs[i + 1]] = r[...]

    cp_kwargs = dict(dimension_semantics=("parallel",))
    footprint = Nb * bytes_per_row * 2
    if footprint > 12 * 1024 * 1024:             # v5e default scoped limit is 16 MiB
        cp_kwargs["vmem_limit_bytes"] = int(footprint * 1.5)

    out_flat = pl.pallas_call(
        kernel,
        out_shape=jax.ShapeDtypeStruct((N, K_out), dtype),
        grid=grid,
        in_specs=[pl.BlockSpec((Nb, k), lambda n: (n, 0)) for k in Ks],
        out_specs=pl.BlockSpec((Nb, K_out), lambda n: (n, 0)),
        compiler_params=pltpu.CompilerParams(**cp_kwargs),
    )(*flat_inputs)

    return out_flat.reshape(N, C_out, h, w)


# ----------------------------------------------------------------------------
# Public wrapper: same semantics as the PyTorch CropConcat module (dim=1).
# ----------------------------------------------------------------------------
def crop_concat(tensors, dim: int = 1):
    assert isinstance(tensors, tuple)
    assert dim == 1, "kernel implements the module's default dim=1 (channels)"
    dtypes = {t.dtype for t in tensors}
    assert len(dtypes) == 1, "mixed-dtype concat not supported"
    dtype = tensors[0].dtype

    N = int(tensors[0].shape[0])
    assert all(int(t.shape[0]) == N for t in tensors)

    h = min(int(t.shape[-2]) for t in tensors)
    w = min(int(t.shape[-1]) for t in tensors)
    Cs = [int(t.shape[1]) for t in tensors]
    C_out = int(sum(Cs))

    try:
        out = _crop_concat_dma(tensors, h, w, Cs, C_out, dtype)
        out = jax.block_until_ready(out)
        return out
    except Exception:
        # Portability fallback: strided HBM->HBM DMA not supported here.
        return _crop_concat_vmem(tensors, h, w, Cs, C_out, dtype)


if __name__ == "__main__":
    key = jax.random.PRNGKey(0)
    k1, k2, k3 = jax.random.split(key, 3)

    # Three NCHW feature maps of slightly different spatial size, mirroring the
    # module's usage `concat((out_conv3, out_deconv3, flow4_up))` at small scale.
    x1 = jax.random.normal(k1, (2, 8, 16, 16), dtype=jnp.float32)
    x2 = jax.random.normal(k2, (2, 4, 14, 14), dtype=jnp.float32)
    x3 = jax.random.normal(k3, (2, 2, 15, 15), dtype=jnp.float32)

    out = crop_concat((x1, x2, x3), dim=1)
    out = jax.block_until_ready(out)

    # Reference (plain JAX) check of the PyTorch semantics.
    h = min(x1.shape[-2], x2.shape[-2], x3.shape[-2])
    w = min(x1.shape[-1], x2.shape[-1], x3.shape[-1])
    ref = jnp.concatenate(
        [x1[..., :h, :w], x2[..., :h, :w], x3[..., :h, :w]], axis=1
    )

    assert out.shape == (2, 14, 14, 14), out.shape
    np.testing.assert_allclose(np.asarray(out), np.asarray(ref), rtol=0, atol=0)

    print("KERNEL_OK")
</pallas_src>

<mosaic_0001>
module attributes {stable_mosaic.version = 11 : i64} {
  func.func @kernel(%arg0: memref<2x8x16x16xf32, #tpu.memory_space<any>>, %arg1: memref<2x4x14x14xf32, #tpu.memory_space<any>>, %arg2: memref<2x2x15x15xf32, #tpu.memory_space<any>>, %arg3: memref<2x14x14x14xf32, #tpu.memory_space<any>>, %arg4: memref<3x!tpu.dma_semaphore, #tpu.memory_space<semaphore_mem>>) attributes {dimension_semantics = [], scalar_prefetch = 0 : i64, scratch_operands = 1 : i64, tpu.core_type = #tpu.core_type<tc>} {
    %c0_i32 = arith.constant 0 : i32
    %c0_i32_0 = arith.constant 0 : i32
    %c0_i32_1 = arith.constant 0 : i32
    %c0_i32_2 = arith.constant 0 : i32
    %c0_i32_3 = arith.constant 0 : i32
    %0 = tpu.memref_slice %arg0[%c0_i32_0, %c0_i32_1, %c0_i32_2, %c0_i32_3] : memref<2x8x16x16xf32, #tpu.memory_space<any>> -> memref<2x8x14x14xf32, #tpu.memory_space<any>>
    %c0_i32_4 = arith.constant 0 : i32
    %c0_i32_5 = arith.constant 0 : i32
    %c0_i32_6 = arith.constant 0 : i32
    %c0_i32_7 = arith.constant 0 : i32
    %1 = tpu.memref_slice %arg3[%c0_i32_4, %c0_i32_5, %c0_i32_6, %c0_i32_7] : memref<2x14x14x14xf32, #tpu.memory_space<any>> -> memref<2x8x14x14xf32, #tpu.memory_space<any>>
    %2 = tpu.memref_slice %arg4[%c0_i32] : memref<3x!tpu.dma_semaphore, #tpu.memory_space<semaphore_mem>> -> memref<1x!tpu.dma_semaphore, #tpu.memory_space<semaphore_mem>>
    %3 = tpu.memref_squeeze %2 : memref<1x!tpu.dma_semaphore, #tpu.memory_space<semaphore_mem>> -> memref<!tpu.dma_semaphore, #tpu.memory_space<semaphore_mem>>
    tpu.enqueue_dma source(%0 : memref<2x8x14x14xf32, #tpu.memory_space<any>>) target(%1 : memref<2x8x14x14xf32, #tpu.memory_space<any>>) target_semaphore(%3 : memref<!tpu.dma_semaphore, #tpu.memory_space<semaphore_mem>>)
    %c1_i32 = arith.constant 1 : i32
    %c0_i32_8 = arith.constant 0 : i32
    %c0_i32_9 = arith.constant 0 : i32
    %c0_i32_10 = arith.constant 0 : i32
    %c0_i32_11 = arith.constant 0 : i32
    %4 = tpu.memref_slice %arg1[%c0_i32_8, %c0_i32_9, %c0_i32_10, %c0_i32_11] : memref<2x4x14x14xf32, #tpu.memory_space<any>> -> memref<2x4x14x14xf32, #tpu.memory_space<any>>
    %c0_i32_12 = arith.constant 0 : i32
    %c8_i32 = arith.constant 8 : i32
    %c0_i32_13 = arith.constant 0 : i32
    %c0_i32_14 = arith.constant 0 : i32
    %5 = tpu.memref_slice %arg3[%c0_i32_12, %c8_i32, %c0_i32_13, %c0_i32_14] : memref<2x14x14x14xf32, #tpu.memory_space<any>> -> memref<2x4x14x14xf32, #tpu.memory_space<any>>
    %6 = tpu.memref_slice %arg4[%c1_i32] : memref<3x!tpu.dma_semaphore, #tpu.memory_space<semaphore_mem>> -> memref<1x!tpu.dma_semaphore, #tpu.memory_space<semaphore_mem>>
    %7 = tpu.memref_squeeze %6 : memref<1x!tpu.dma_semaphore, #tpu.memory_space<semaphore_mem>> -> memref<!tpu.dma_semaphore, #tpu.memory_space<semaphore_mem>>
    tpu.enqueue_dma source(%4 : memref<2x4x14x14xf32, #tpu.memory_space<any>>) target(%5 : memref<2x4x14x14xf32, #tpu.memory_space<any>>) target_semaphore(%7 : memref<!tpu.dma_semaphore, #tpu.memory_space<semaphore_mem>>)
    %c2_i32 = arith.constant 2 : i32
    %c0_i32_15 = arith.constant 0 : i32
    %c0_i32_16 = arith.constant 0 : i32
    %c0_i32_17 = arith.constant 0 : i32
    %c0_i32_18 = arith.constant 0 : i32
    %8 = tpu.memref_slice %arg2[%c0_i32_15, %c0_i32_16, %c0_i32_17, %c0_i32_18] : memref<2x2x15x15xf32, #tpu.memory_space<any>> -> memref<2x2x14x14xf32, #tpu.memory_space<any>>
    %c0_i32_19 = arith.constant 0 : i32
    %c12_i32 = arith.constant 12 : i32
    %c0_i32_20 = arith.constant 0 : i32
    %c0_i32_21 = arith.constant 0 : i32
    %9 = tpu.memref_slice %arg3[%c0_i32_19, %c12_i32, %c0_i32_20, %c0_i32_21] : memref<2x14x14x14xf32, #tpu.memory_space<any>> -> memref<2x2x14x14xf32, #tpu.memory_space<any>>
    %10 = tpu.memref_slice %arg4[%c2_i32] : memref<3x!tpu.dma_semaphore, #tpu.memory_space<semaphore_mem>> -> memref<1x!tpu.dma_semaphore, #tpu.memory_space<semaphore_mem>>
    %11 = tpu.memref_squeeze %10 : memref<1x!tpu.dma_semaphore, #tpu.memory_space<semaphore_mem>> -> memref<!tpu.dma_semaphore, #tpu.memory_space<semaphore_mem>>
    tpu.enqueue_dma source(%8 : memref<2x2x14x14xf32, #tpu.memory_space<any>>) target(%9 : memref<2x2x14x14xf32, #tpu.memory_space<any>>) target_semaphore(%11 : memref<!tpu.dma_semaphore, #tpu.memory_space<semaphore_mem>>)
    %c0_i32_22 = arith.constant 0 : i32
    %c0_i32_23 = arith.constant 0 : i32
    %c0_i32_24 = arith.constant 0 : i32
    %c0_i32_25 = arith.constant 0 : i32
    %c0_i32_26 = arith.constant 0 : i32
    %12 = tpu.memref_slice %arg0[%c0_i32_23, %c0_i32_24, %c0_i32_25, %c0_i32_26] : memref<2x8x16x16xf32, #tpu.memory_space<any>> -> memref<2x8x14x14xf32, #tpu.memory_space<any>>
    %c0_i32_27 = arith.constant 0 : i32
    %c0_i32_28 = arith.constant 0 : i32
    %c0_i32_29 = arith.constant 0 : i32
    %c0_i32_30 = arith.constant 0 : i32
    %13 = tpu.memref_slice %arg3[%c0_i32_27, %c0_i32_28, %c0_i32_29, %c0_i32_30] : memref<2x14x14x14xf32, #tpu.memory_space<any>> -> memref<2x8x14x14xf32, #tpu.memory_space<any>>
    %14 = tpu.memref_slice %arg4[%c0_i32_22] : memref<3x!tpu.dma_semaphore, #tpu.memory_space<semaphore_mem>> -> memref<1x!tpu.dma_semaphore, #tpu.memory_space<semaphore_mem>>
    %15 = tpu.memref_squeeze %14 : memref<1x!tpu.dma_semaphore, #tpu.memory_space<semaphore_mem>> -> memref<!tpu.dma_semaphore, #tpu.memory_space<semaphore_mem>>
    tpu.wait_dma2 semaphore(%15 : memref<!tpu.dma_semaphore, #tpu.memory_space<semaphore_mem>>) src(%12 : memref<2x8x14x14xf32, #tpu.memory_space<any>>) dst(%13 : memref<2x8x14x14xf32, #tpu.memory_space<any>>)
    %c1_i32_31 = arith.constant 1 : i32
    %c0_i32_32 = arith.constant 0 : i32
    %c0_i32_33 = arith.constant 0 : i32
    %c0_i32_34 = arith.constant 0 : i32
    %c0_i32_35 = arith.constant 0 : i32
    %16 = tpu.memref_slice %arg1[%c0_i32_32, %c0_i32_33, %c0_i32_34, %c0_i32_35] : memref<2x4x14x14xf32, #tpu.memory_space<any>> -> memref<2x4x14x14xf32, #tpu.memory_space<any>>
    %c0_i32_36 = arith.constant 0 : i32
    %c8_i32_37 = arith.constant 8 : i32
    %c0_i32_38 = arith.constant 0 : i32
    %c0_i32_39 = arith.constant 0 : i32
    %17 = tpu.memref_slice %arg3[%c0_i32_36, %c8_i32_37, %c0_i32_38, %c0_i32_39] : memref<2x14x14x14xf32, #tpu.memory_space<any>> -> memref<2x4x14x14xf32, #tpu.memory_space<any>>
    %18 = tpu.memref_slice %arg4[%c1_i32_31] : memref<3x!tpu.dma_semaphore, #tpu.memory_space<semaphore_mem>> -> memref<1x!tpu.dma_semaphore, #tpu.memory_space<semaphore_mem>>
    %19 = tpu.memref_squeeze %18 : memref<1x!tpu.dma_semaphore, #tpu.memory_space<semaphore_mem>> -> memref<!tpu.dma_semaphore, #tpu.memory_space<semaphore_mem>>
    tpu.wait_dma2 semaphore(%19 : memref<!tpu.dma_semaphore, #tpu.memory_space<semaphore_mem>>) src(%16 : memref<2x4x14x14xf32, #tpu.memory_space<any>>) dst(%17 : memref<2x4x14x14xf32, #tpu.memory_space<any>>)
    %c2_i32_40 = arith.constant 2 : i32
    %c0_i32_41 = arith.constant 0 : i32
    %c0_i32_42 = arith.constant 0 : i32
    %c0_i32_43 = arith.constant 0 : i32
    %c0_i32_44 = arith.constant 0 : i32
    %20 = tpu.memref_slice %arg2[%c0_i32_41, %c0_i32_42, %c0_i32_43, %c0_i32_44] : memref<2x2x15x15xf32, #tpu.memory_space<any>> -> memref<2x2x14x14xf32, #tpu.memory_space<any>>
    %c0_i32_45 = arith.constant 0 : i32
    %c12_i32_46 = arith.constant 12 : i32
    %c0_i32_47 = arith.constant 0 : i32
    %c0_i32_48 = arith.constant 0 : i32
    %21 = tpu.memref_slice %arg3[%c0_i32_45, %c12_i32_46, %c0_i32_47, %c0_i32_48] : memref<2x14x14x14xf32, #tpu.memory_space<any>> -> memref<2x2x14x14xf32, #tpu.memory_space<any>>
    %22 = tpu.memref_slice %arg4[%c2_i32_40] : memref<3x!tpu.dma_semaphore, #tpu.memory_space<semaphore_mem>> -> memref<1x!tpu.dma_semaphore, #tpu.memory_space<semaphore_mem>>
    %23 = tpu.memref_squeeze %22 : memref<1x!tpu.dma_semaphore, #tpu.memory_space<semaphore_mem>> -> memref<!tpu.dma_semaphore, #tpu.memory_space<semaphore_mem>>
    tpu.wait_dma2 semaphore(%23 : memref<!tpu.dma_semaphore, #tpu.memory_space<semaphore_mem>>) src(%20 : memref<2x2x14x14xf32, #tpu.memory_space<any>>) dst(%21 : memref<2x2x14x14xf32, #tpu.memory_space<any>>)
    return
  }
}

module attributes {stable_mosaic.version = 11 : i64} {
  func.func @kernel(%arg0: i32, %arg1: memref<2x1568xf32, #tpu.memory_space<vmem>>, %arg2: memref<2x784xf32, #tpu.memory_space<vmem>>, %arg3: memref<2x392xf32, #tpu.memory_space<vmem>>, %arg4: memref<2x2744xf32, #tpu.memory_space<vmem>>) attributes {dimension_semantics = [#tpu.dimension_semantics<parallel>], iteration_bounds = array<i64: 1>, scalar_prefetch = 0 : i64, scratch_operands = 0 : i64, tpu.core_type = #tpu.core_type<tc>, window_params = [{transform_indices = @transform_0, window_bounds = array<i64: 2, 1568>}, {transform_indices = @transform_1, window_bounds = array<i64: 2, 784>}, {transform_indices = @transform_2, window_bounds = array<i64: 2, 392>}, {transform_indices = @transform_3, window_bounds = array<i64: 2, 2744>}]} {
    %c0 = arith.constant 0 : index
    %c0_0 = arith.constant 0 : index
    %0 = vector.load %arg1[%c0, %c0_0] : memref<2x1568xf32, #tpu.memory_space<vmem>>, vector<2x1568xf32>
    %c0_1 = arith.constant 0 : index
    %c0_2 = arith.constant 0 : index
    %1 = vector.load %arg4[%c0_1, %c0_2] : memref<2x2744xf32, #tpu.memory_space<vmem>>, vector<2x1568xf32>
    tpu.vector_store %arg4[%c0_1, %c0_2], %0 {strides = array<i32>} : memref<2x2744xf32, #tpu.memory_space<vmem>>, vector<2x1568xf32>,
    %c0_3 = arith.constant 0 : index
    %c0_4 = arith.constant 0 : index
    %2 = vector.load %arg2[%c0_3, %c0_4] : memref<2x784xf32, #tpu.memory_space<vmem>>, vector<2x784xf32>
    %c0_5 = arith.constant 0 : index
    %c1568 = arith.constant 1568 : index
    %3 = vector.load %arg4[%c0_5, %c1568] : memref<2x2744xf32, #tpu.memory_space<vmem>>, vector<2x784xf32>
    tpu.vector_store %arg4[%c0_5, %c1568], %2 {strides = array<i32>} : memref<2x2744xf32, #tpu.memory_space<vmem>>, vector<2x784xf32>,
    %c0_6 = arith.constant 0 : index
    %c0_7 = arith.constant 0 : index
    %4 = vector.load %arg3[%c0_6, %c0_7] : memref<2x392xf32, #tpu.memory_space<vmem>>, vector<2x392xf32>
    %c0_8 = arith.constant 0 : index
    %c2352 = arith.constant 2352 : index
    %5 = vector.load %arg4[%c0_8, %c2352] : memref<2x2744xf32, #tpu.memory_space<vmem>>, vector<2x392xf32>
    tpu.vector_store %arg4[%c0_8, %c2352], %4 {strides = array<i32>} : memref<2x2744xf32, #tpu.memory_space<vmem>>, vector<2x392xf32>,
    return
  }
  func.func @transform_0(%arg0: i32) -> (i32, i32) {
    %c0_i32 = arith.constant 0 : i32
    %c0_i32_0 = arith.constant 0 : i32
    return %arg0, %c0_i32 : i32, i32
  }
  func.func @transform_1(%arg0: i32) -> (i32, i32) {
    %c0_i32 = arith.constant 0 : i32
    %c0_i32_0 = arith.constant 0 : i32
    return %arg0, %c0_i32 : i32, i32
  }
  func.func @transform_2(%arg0: i32) -> (i32, i32) {
    %c0_i32 = arith.constant 0 : i32
    %c0_i32_0 = arith.constant 0 : i32
    return %arg0, %c0_i32 : i32, i32
  }
  func.func @transform_3(%arg0: i32) -> (i32, i32) {
    %c0_i32 = arith.constant 0 : i32
    %c0_i32_0 = arith.constant 0 : i32
    return %arg0, %c0_i32 : i32, i32
  }
}

</mosaic_0001>

<llo_original>
// kernel: tpu_custom_call.1
$region0: #{tpu_custom_call.1}
  #allocation0 [shape = 'u32[]', space=smem, size = 0x4, offset = 0x4, fixed_abs, tag = 'smem constant byte address 0x4 - core index']
  #allocation1 [shape = 'u32[144,128]{1,0:T(1,128)}', space=vmem, size = 0x12000, scoped, tag = 'internal scratch']
  %s0 = inlined_call_operand.hbm [shape: f32[2,1568], index: 0, kind: input, shape index: {}]
  %s1 = inlined_call_operand.hbm [shape: f32[2,784], index: 1, kind: input, shape index: {}]
  %s2 = inlined_call_operand.hbm [shape: f32[2,392], index: 2, kind: input, shape index: {}]
  %s3 = inlined_call_operand.hbm [shape: f32[2,2744], index: 3, kind: output, shape index: {}]
  %s4 = sld [smem:[#allocation0]]
  $region34: #{tpu_custom_call.1} parent=0
    _
  %s6 = ssub.s32 1, %s4
  %s7 = scalar_select 0, %s6, %s4
  $region1: #{tpu_custom_call.1} parent=0
    #allocation2 [shape = 'u8[13312]{0}', space=vmem, size = 0x3400, scoped, tag = 'input window, operand 0, single buffered']
    #allocation3 [shape = 's32[1]{0}', space=sflag, size = 0x4, scoped, tag = 'scoped memory for tpu_custom_call.1']
    #allocation4 [shape = 's32[1]{0}', space=sflag, size = 0x4, scoped, tag = 'scoped memory for tpu_custom_call.1']
    #allocation5 [shape = 'u8[7168]{0}', space=vmem, size = 0x1c00, scoped, tag = 'input window, operand 1, single buffered']
    #allocation6 [shape = 's32[1]{0}', space=sflag, size = 0x4, scoped, tag = 'scoped memory for tpu_custom_call.1']
    #allocation7 [shape = 'u8[4096]{0}', space=vmem, size = 0x1000, scoped, tag = 'input window, operand 2, single buffered']
    #allocation8 [shape = 'u8[22528]{0}', space=vmem, size = 0x5800, scoped, tag = 'output window, operand 0, single buffered']
    %8 = vsyncpa [#allocation3], 0
    %9 = vsyncpa [#allocation6], 0
    %10 = vsyncpa [#allocation4], 0
    // Predicated region
    $region2: #{tpu_custom_call.1} parent=1 // pred_check
      _
    $region3: #{tpu_custom_call.1} parent=1 // pred_check_branch
      %12 = sbr.rel (0) target = $region5
    $region4: #{tpu_custom_call.1} parent=1 // pred_region
      %s14 = ssub.s32 416, 416
      %15 = vsyncadd [#allocation3], %s14
      %s17 = sshll.u32 [#allocation2], 4
      %s18 = int_to_ptr.vmem [resolvable:$true] %s17
      %20 = dma.hbm_to_vmem [thread:$0]  %s0, 416, %s18, [#allocation3]
    $region5: #{tpu_custom_call.1} parent=1 // pred_fallthru
      _
    // Predicated region
    $region6: #{tpu_custom_call.1} parent=1 // pred_check
      _
    $region7: #{tpu_custom_call.1} parent=1 // pred_check_branch
      %22 = sbr.rel (0) target = $region9
    $region8: #{tpu_custom_call.1} parent=1 // pred_region
      %s24 = ssub.s32 224, 224
      %25 = vsyncadd [#allocation6], %s24
      %s27 = sshll.u32 [#allocation5], 4
      %s28 = int_to_ptr.vmem [resolvable:$true] %s27
      %30 = dma.hbm_to_vmem [thread:$0]  %s1, 224, %s28, [#allocation6]
    $region9: #{tpu_custom_call.1} parent=1 // pred_fallthru
      _
    // Predicated region
    $region10: #{tpu_custom_call.1} parent=1 // pred_check
      _
    $region11: #{tpu_custom_call.1} parent=1 // pred_check_branch
      %32 = sbr.rel (0) target = $region13
    $region12: #{tpu_custom_call.1} parent=1 // pred_region
      %s34 = ssub.s32 128, 128
      %35 = vsyncadd [#allocation6], %s34
      %s37 = sshll.u32 [#allocation7], 4
      %s38 = int_to_ptr.vmem [resolvable:$true] %s37
      %40 = dma.hbm_to_vmem [thread:$0]  %s2, 128, %s38, [#allocation6]
    $region13: #{tpu_custom_call.1} parent=1 // pred_fallthru
      _
    // Predicated region
    $region14: #{tpu_custom_call.1} parent=1 // pred_check
      _
    $region15: #{tpu_custom_call.1} parent=1 // pred_check_branch
      %42 = sbr.rel (0) target = $region17
    $region16: #{tpu_custom_call.1} parent=1 // pred_region
      %43 = dma.done [#allocation3], 416
    $region17: #{tpu_custom_call.1} parent=1 // pred_fallthru
      _
    // Predicated region
    $region18: #{tpu_custom_call.1} parent=1 // pred_check
      _
    $region19: #{tpu_custom_call.1} parent=1 // pred_check_branch
      %45 = sbr.rel (0) target = $region21
    $region20: #{tpu_custom_call.1} parent=1 // pred_region
      %46 = dma.done [#allocation6], 224
    $region21: #{tpu_custom_call.1} parent=1 // pred_fallthru
      _
    // Predicated region
    $region22: #{tpu_custom_call.1} parent=1 // pred_check
      _
    $region23: #{tpu_custom_call.1} parent=1 // pred_check_branch
      %48 = sbr.rel (0) target = $region25
    $region24: #{tpu_custom_call.1} parent=1 // pred_region
      %49 = dma.done [#allocation6], 128
    $region25: #{tpu_custom_call.1} parent=1 // pred_fallthru
      _
    %v50 = vld [vmem:[#allocation2] sm:$0xff]
    %v51 = vld [vmem:[#allocation2 + $0x8] sm:$0xff]
    %v52 = vld [vmem:[#allocation2 + $0x10] sm:$0xff]
    %v53 = vld [vmem:[#allocation2 + $0x18] sm:$0x3]
    %54 = vst [vmem:[#allocation8] sm:$0xff] %v50
    %55 = vst [vmem:[#allocation8 + $0x8] sm:$0xff] %v51
    %56 = vst [vmem:[#allocation8 + $0x10] sm:$0xff] %v52
    %vm57 = vcmask 254976
    %58 = vst.msk [vmem:[#allocation8 + $0x18] sm:$0x3] %vm57, %v53
    %v59 = vld [vmem:[#allocation5] sm:$0xff]
    %v60 = vld [vmem:[#allocation5 + $0x8] sm:$0x3f]
    %63 = vrot.lane.b32.xlu0 %v59, 32
    %v64 = vpop.permute.xlu0 %63
    %65 = vrot.lane.b32.xlu0 %v60, 32
    %v66 = vpop.permute.xlu0 %65
    %v67 = vrot.slane %v64, 6
    %v68 = vrot.slane %v66, 6
    %vm69 = vcmask 261120
    %v70 = vsel %vm69, %v67, %v64
    %vm71 = vcmask 1041408
    %v72 = vsel %vm71, %v67, %v68
    %v73 = vsel %vm69, %v72, %v66
    %vm76 = vcmask 1041664
    %vm77 = vcmask 1043458
    %vm78 = vmor %vm77, %vm76
    %vm79 = vcmask 1045508
    %vm80 = vmor %vm79, %vm78
    %vm81 = vcmask 1047558
    %vm82 = vmor %vm81, %vm80
    %83 = vst.msk [vmem:[#allocation8 + $0x18] sm:$0xff] %vm82, %v70
    %vm84 = vmor %vm77, %vm71
    %vm85 = vcmask 390148
    %vm86 = vmor %vm85, %vm84
    %87 = vst.msk [vmem:[#allocation8 + $0x20] sm:$0x3f] %vm86, %v73
    %v88 = vld [vmem:[#allocation7] sm:$0xff]
    %90 = vrot.lane.b32.xlu0 %v88, 48
    %v91 = vpop.permute.xlu0 %90
    %v92 = vrot.slane %v91, 6
    %vm93 = vcmask 392192
    %v94 = vsel %vm93, %v92, %v91
    %vm96 = vcmask 1041792
    %vm97 = vmor %vm77, %vm96
    %vm98 = vmor %vm79, %vm97
    %vm99 = vcmask 457734
    %vm100 = vmor %vm99, %vm98
    %101 = vst.msk [vmem:[#allocation8 + $0x24] sm:$0xff] %vm100, %v94
    // Predicated region
    $region26: #{tpu_custom_call.1} parent=1 // pred_check
      _
    $region27: #{tpu_custom_call.1} parent=1 // pred_check_branch
      %103 = sbr.rel (0) target = $region29
    $region28: #{tpu_custom_call.1} parent=1 // pred_region
      %s105 = ssub.s32 704, 704
      %106 = vsyncadd [#allocation4], %s105
      %s108 = sshll.u32 [#allocation8], 4
      %s109 = int_to_ptr.vmem [resolvable:$true] %s108
      %111 = dma.vmem_to_hbm [thread:$0]  %s109, 704, %s3, [#allocation4]
    $region29: #{tpu_custom_call.1} parent=1 // pred_fallthru
      _
    // Predicated region
    $region30: #{tpu_custom_call.1} parent=1 // pred_check
      _
    $region31: #{tpu_custom_call.1} parent=1 // pred_check_branch
      %113 = sbr.rel (0) target = $region33
    $region32: #{tpu_custom_call.1} parent=1 // pred_region
      %114 = dma.done [#allocation4], 704
    $region33: #{tpu_custom_call.1} parent=1 // pred_fallthru
      _
    %115 = vsyncpa [#allocation3], 1
    %116 = vsyncpa [#allocation6], 1
    %117 = vsyncpa [#allocation4], 1

</llo_original>
